<compile_context>
chip_gen: v7x
topology: tpu7x:2x2x1
jax: 0.10.0
libtpu: 0.0.40
codegen_flags: <defaults>
</compile_context>

<pallas_src>
import functools

import jax
import jax.numpy as jnp
from jax.experimental import pallas as pl
from jax.experimental.pallas import tpu as pltpu

LANE = 128   # lane-axis padding granularity


def _round_up(x, m):
    return (x + m - 1) // m * m


def _tpu_generation():
    try:
        kind = jax.devices()[0].device_kind.lower()
    except Exception:
        return 0
    for g in (7, 6, 5, 4, 3, 2):
        if f"v{g}" in kind or f"tpu{g}" in kind:
            return g
    return 0


def _tile_rows():
    # v6e/v7x MXU is 2x 256x256 -> fill it with 256 LHS rows; v5e/older are 128x128.
    return 256 if _tpu_generation() >= 6 else 128


def _vmem_limit_bytes():
    g = _tpu_generation()
    if g >= 7:
        return 48 * 1024 * 1024     # 64 MiB physical per TC -> leave headroom
    if g >= 5:
        return 96 * 1024 * 1024     # 128 MiB physical
    return 32 * 1024 * 1024


# ---------------------------------------------------------------------------
# Kernel 1: per-layer projection   HWs_b = H @ W_self + b   ,   HWn = H @ W_neigh
# ---------------------------------------------------------------------------
def sage_project_kernel(h_ref, ws_ref, wn_ref, b_ref, hws_ref, hwn_ref):
    """h_ref: (TN, Fi) bf16; ws/wn: (Fi, Fo) bf16 resident; b: (1, Fo) f32.
    Two separate MXU dots (no concat), f32 accumulation."""
    h = h_ref[...]
    hws = jnp.dot(h, ws_ref[...], preferred_element_type=jnp.float32) + b_ref[...]
    hwn = jnp.dot(h, wn_ref[...], preferred_element_type=jnp.float32)
    hws_ref[...] = hws                                    # f32 (carries bias + self path)
    hwn_ref[...] = hwn.astype(hwn_ref.dtype)              # bf16 (MXU operand of kernel 2)


def sage_project(h_pad, ws, wn, b_pad, tn):
    n_pad, fi_pad = h_pad.shape
    fo_pad = ws.shape[1]
    cost = pl.CostEstimate(
        flops=2 * 2 * n_pad * fi_pad * fo_pad,
        transcendentals=0,
        bytes_accessed=(h_pad.size * 2 + ws.size * 2 + wn.size * 2 + b_pad.size * 4
                        + n_pad * fo_pad * (4 + 2)),
    )
    return pl.pallas_call(
        sage_project_kernel,
        out_shape=(jax.ShapeDtypeStruct((n_pad, fo_pad), jnp.float32),
                   jax.ShapeDtypeStruct((n_pad, fo_pad), jnp.bfloat16)),
        grid_spec=pltpu.PrefetchScalarGridSpec(
            num_scalar_prefetch=0,
            grid=(n_pad // tn,),
            in_specs=[
                pl.BlockSpec((tn, fi_pad), lambda i: (i, 0)),          # H row tile
                pl.BlockSpec((fi_pad, fo_pad), lambda i: (0, 0)),      # W_self (resident)
                pl.BlockSpec((fi_pad, fo_pad), lambda i: (0, 0)),      # W_neigh (resident)
                pl.BlockSpec((1, fo_pad), lambda i: (0, 0)),           # bias
            ],
            out_specs=(pl.BlockSpec((tn, fo_pad), lambda i: (i, 0)),
                       pl.BlockSpec((tn, fo_pad), lambda i: (i, 0))),
        ),
        compiler_params=pltpu.CompilerParams(
            dimension_semantics=("parallel",),
            vmem_limit_bytes=_vmem_limit_bytes(),
        ),
        cost_estimate=cost,
    )(h_pad, ws, wn, b_pad)


# ---------------------------------------------------------------------------
# Kernel 2: mean aggregation + combine   out = HWs_b + inv_deg * (A01 @ HWn)  [+ ReLU]
# ---------------------------------------------------------------------------
def sage_aggregate_kernel(a_ref, inv_ref, hwn_ref, hws_ref, o_ref, *, apply_relu):
    """a_ref:   (TN, Np) bf16  0/1 adjacency rows for this destination tile
       inv_ref: (TN, 1)  f32   1/deg per destination node
       hwn_ref: (Np, Fo) bf16  H @ W_neigh (VMEM-resident across the grid)
       hws_ref: (TN, Fo) f32   H @ W_self + b for this tile
       o_ref:   (TN, Fo)       bf16 (hidden layers) / f32 (final layer)"""
    neigh = jnp.dot(a_ref[...], hwn_ref[...], preferred_element_type=jnp.float32)
    out = hws_ref[...] + neigh * inv_ref[...]             # f32 scaling on the VPU
    if apply_relu:
        out = jnp.maximum(out, 0.0)
    o_ref[...] = out.astype(o_ref.dtype)


def sage_aggregate(a01, inv_deg, hwn, hws_b, apply_relu, out_dtype, tn):
    n_pad = a01.shape[0]
    fo_pad = hwn.shape[1]
    cost = pl.CostEstimate(
        flops=2 * n_pad * n_pad * fo_pad + 3 * n_pad * fo_pad,
        transcendentals=0,
        bytes_accessed=(a01.size * 2 + inv_deg.size * 4 + hwn.size * 2 + hws_b.size * 4
                        + n_pad * fo_pad * jnp.dtype(out_dtype).itemsize),
    )
    kernel = functools.partial(sage_aggregate_kernel, apply_relu=apply_relu)
    return pl.pallas_call(
        kernel,
        out_shape=jax.ShapeDtypeStruct((n_pad, fo_pad), out_dtype),
        grid_spec=pltpu.PrefetchScalarGridSpec(
            num_scalar_prefetch=0,
            grid=(n_pad // tn,),
            in_specs=[
                pl.BlockSpec((tn, n_pad), lambda i: (i, 0)),           # adjacency rows
                pl.BlockSpec((tn, 1), lambda i: (i, 0)),               # 1/deg
                pl.BlockSpec((n_pad, fo_pad), lambda i: (0, 0)),       # HWn (resident)
                pl.BlockSpec((tn, fo_pad), lambda i: (i, 0)),          # HWs + b tile
            ],
            out_specs=pl.BlockSpec((tn, fo_pad), lambda i: (i, 0)),
        ),
        compiler_params=pltpu.CompilerParams(
            dimension_semantics=("parallel",),
            vmem_limit_bytes=_vmem_limit_bytes(),
        ),
        cost_estimate=cost,
    )(a01, inv_deg, hwn, hws_b)


# ---------------------------------------------------------------------------
# Model wrapper
# ---------------------------------------------------------------------------
def init_graphsage_params(key, in_feats, n_hidden, n_classes, n_layers):
    """Deterministic Glorot-style init of per-layer (W_self, W_neigh, b)."""
    if n_layers == 1:
        dims = [(in_feats, n_classes)]
    else:
        dims = [(in_feats, n_hidden)]
        dims += [(n_hidden, n_hidden)] * (n_layers - 2)
        dims += [(n_hidden, n_classes)]
    params = []
    for (fin, fout) in dims:
        key, k1, k2 = jax.random.split(key, 3)
        scale = jnp.sqrt(2.0 / (fin + fout)).astype(jnp.float32)
        w_self = jax.random.normal(k1, (fin, fout), jnp.float32) * scale
        w_neigh = jax.random.normal(k2, (fin, fout), jnp.float32) * scale
        b = jnp.zeros((1, fout), jnp.float32)
        params.append((w_self, w_neigh, b))
    return params


def graphsage_forward(adj01, feat, params):
    """adj01: (N, N) 0/1 adjacency (float). feat: (N, Fin)."""
    n, fin = feat.shape
    n_classes = params[-1][0].shape[1]
    tn = _tile_rows()
    n_pad = _round_up(n, tn)

    # 0/1 adjacency built directly in bf16 (exact values, no f32 O(N^2) intermediate);
    # per-row inverse degree kept in f32 and applied inside the kernel.
    a_pad = jnp.zeros((n_pad, n_pad), jnp.bfloat16).at[:n, :n].set(adj01.astype(jnp.bfloat16))
    deg = jnp.maximum(adj01.astype(jnp.float32).sum(axis=1, keepdims=True), 1.0)
    inv_deg = jnp.zeros((n_pad, 1), jnp.float32).at[:n].set(1.0 / deg)

    # Lane-dense padded features, bf16 (MXU operand dtype for the projection kernel).
    h = jnp.zeros((n_pad, _round_up(fin, LANE)), jnp.bfloat16).at[:n, :fin].set(
        feat.astype(jnp.bfloat16))

    for l, (w_self, w_neigh, b) in enumerate(params):
        fi, fo = w_self.shape
        fi_pad, fo_pad = _round_up(fi, LANE), _round_up(fo, LANE)
        assert h.shape[1] == fi_pad
        ws = jnp.zeros((fi_pad, fo_pad), jnp.bfloat16).at[:fi, :fo].set(
            w_self.astype(jnp.bfloat16))
        wn = jnp.zeros((fi_pad, fo_pad), jnp.bfloat16).at[:fi, :fo].set(
            w_neigh.astype(jnp.bfloat16))
        b_pad = jnp.zeros((1, fo_pad), jnp.float32).at[:, :fo].set(b)

        last = (l == len(params) - 1)
        hws_b, hwn = sage_project(h, ws, wn, b_pad, tn)
        h = sage_aggregate(a_pad, inv_deg, hwn, hws_b,
                           apply_relu=not last,
                           out_dtype=jnp.float32 if last else jnp.bfloat16,
                           tn=tn)

    return h[:n, :n_classes]


if __name__ == "__main__":
    key = jax.random.PRNGKey(0)
    k_adj, k_feat, k_param = jax.random.split(key, 3)

    # Small synthetic graph (N not a multiple of the row tile, exercising the padding path).
    N = 200
    IN_FEATS = 32
    N_HIDDEN = 64
    N_CLASSES = 16
    N_LAYERS = 2

    adj01 = jax.random.bernoulli(k_adj, p=0.1, shape=(N, N)).astype(jnp.float32)  # 0/1
    feat = jax.random.normal(k_feat, (N, IN_FEATS), jnp.float32)

    params = init_graphsage_params(k_param, IN_FEATS, N_HIDDEN, N_CLASSES, N_LAYERS)

    out = jax.block_until_ready(graphsage_forward(adj01, feat, params))

    # Pure-JAX f32 reference of the same math (eval-mode forward). The kernels feed the
    # MXU bf16 operands with f32 accumulation, so tolerances are loosened accordingly.
    deg = jnp.maximum(adj01.sum(axis=1, keepdims=True), 1.0)
    a_norm = adj01 / deg
    h_ref = feat
    for l, (w_self, w_neigh, b) in enumerate(params):
        h_ref = h_ref @ w_self + (a_norm @ h_ref) @ w_neigh + b
        if l != len(params) - 1:
            h_ref = jnp.maximum(h_ref, 0.0)

    assert out.shape == (N, N_CLASSES)
    err = float(jnp.max(jnp.abs(out - h_ref)))
    assert jnp.allclose(out, h_ref, atol=5e-2, rtol=5e-2), err

    print("KERNEL_OK")
</pallas_src>

<mosaic_0001>
module attributes {stable_mosaic.version = 11 : i64} {
  func.func @sage_project_kernel(%arg0: i32, %arg1: memref<128x128xbf16, #tpu.memory_space<vmem>>, %arg2: memref<128x128xbf16, #tpu.memory_space<vmem>>, %arg3: memref<128x128xbf16, #tpu.memory_space<vmem>>, %arg4: memref<1x128xf32, #tpu.memory_space<vmem>>, %arg5: memref<128x128xf32, #tpu.memory_space<vmem>>, %arg6: memref<128x128xbf16, #tpu.memory_space<vmem>>) attributes {dimension_semantics = [#tpu.dimension_semantics<parallel>], iteration_bounds = array<i64: 2>, scalar_prefetch = 0 : i64, scratch_operands = 0 : i64, tpu.core_type = #tpu.core_type<tc>, window_params = [{transform_indices = @transform_0, window_bounds = array<i64: 128, 128>}, {pipeline_mode = #tpu.pipeline_mode<synchronous>, transform_indices = @transform_1, window_bounds = array<i64: 128, 128>}, {pipeline_mode = #tpu.pipeline_mode<synchronous>, transform_indices = @transform_2, window_bounds = array<i64: 128, 128>}, {pipeline_mode = #tpu.pipeline_mode<synchronous>, transform_indices = @transform_3, window_bounds = array<i64: 1, 128>}, {transform_indices = @transform_4, window_bounds = array<i64: 128, 128>}, {transform_indices = @transform_5, window_bounds = array<i64: 128, 128>}]} {
    %c0 = arith.constant 0 : index
    %c0_0 = arith.constant 0 : index
    %0 = vector.load %arg1[%c0, %c0_0] : memref<128x128xbf16, #tpu.memory_space<vmem>>, vector<128x128xbf16>
    %c0_1 = arith.constant 0 : index
    %c0_2 = arith.constant 0 : index
    %1 = vector.load %arg2[%c0_1, %c0_2] : memref<128x128xbf16, #tpu.memory_space<vmem>>, vector<128x128xbf16>
    %cst = arith.constant dense<0.000000e+00> : vector<128x128xf32>
    %2 = tpu.matmul %0, %1, %cst {dimension_numbers = #tpu.dot_dimension_numbers<[1], [0], [0], [1], [0, 0, 1, 1], [], []>} : vector<128x128xbf16>, vector<128x128xbf16>, vector<128x128xf32> -> vector<128x128xf32>
    %c0_3 = arith.constant 0 : index
    %c0_4 = arith.constant 0 : index
    %3 = vector.load %arg4[%c0_3, %c0_4] : memref<1x128xf32, #tpu.memory_space<vmem>>, vector<1x128xf32>
    %4 = vector.broadcast %3 : vector<1x128xf32> to vector<128x128xf32>
    %5 = arith.addf %2, %4 : vector<128x128xf32>
    %c0_5 = arith.constant 0 : index
    %c0_6 = arith.constant 0 : index
    %6 = vector.load %arg3[%c0_5, %c0_6] : memref<128x128xbf16, #tpu.memory_space<vmem>>, vector<128x128xbf16>
    %cst_7 = arith.constant dense<0.000000e+00> : vector<128x128xf32>
    %7 = tpu.matmul %0, %6, %cst_7 {dimension_numbers = #tpu.dot_dimension_numbers<[1], [0], [0], [1], [0, 0, 1, 1], [], []>} : vector<128x128xbf16>, vector<128x128xbf16>, vector<128x128xf32> -> vector<128x128xf32>
    %c0_8 = arith.constant 0 : index
    %c0_9 = arith.constant 0 : index
    %8 = vector.load %arg5[%c0_8, %c0_9] : memref<128x128xf32, #tpu.memory_space<vmem>>, vector<128x128xf32>
    tpu.vector_store %arg5[%c0_8, %c0_9], %5 {strides = array<i32>} : memref<128x128xf32, #tpu.memory_space<vmem>>, vector<128x128xf32>,
    %9 = arith.truncf %7 : vector<128x128xf32> to vector<128x128xbf16>
    %c0_10 = arith.constant 0 : index
    %c0_11 = arith.constant 0 : index
    %10 = vector.load %arg6[%c0_10, %c0_11] : memref<128x128xbf16, #tpu.memory_space<vmem>>, vector<128x128xbf16>
    tpu.vector_store %arg6[%c0_10, %c0_11], %9 {strides = array<i32>} : memref<128x128xbf16, #tpu.memory_space<vmem>>, vector<128x128xbf16>,
    return
  }
  func.func @transform_0(%arg0: i32) -> (i32, i32) {
    %c0_i32 = arith.constant 0 : i32
    %c0_i32_0 = arith.constant 0 : i32
    return %arg0, %c0_i32 : i32, i32
  }
  func.func @transform_1(%arg0: i32) -> (i32, i32) {
    %c0_i32 = arith.constant 0 : i32
    %c0_i32_0 = arith.constant 0 : i32
    %c0_i32_1 = arith.constant 0 : i32
    return %c0_i32, %c0_i32_0 : i32, i32
  }
  func.func @transform_2(%arg0: i32) -> (i32, i32) {
    %c0_i32 = arith.constant 0 : i32
    %c0_i32_0 = arith.constant 0 : i32
    %c0_i32_1 = arith.constant 0 : i32
    return %c0_i32, %c0_i32_0 : i32, i32
  }
  func.func @transform_3(%arg0: i32) -> (i32, i32) {
    %c0_i32 = arith.constant 0 : i32
    %c0_i32_0 = arith.constant 0 : i32
    %c0_i32_1 = arith.constant 0 : i32
    return %c0_i32, %c0_i32_0 : i32, i32
  }
  func.func @transform_4(%arg0: i32) -> (i32, i32) {
    %c0_i32 = arith.constant 0 : i32
    %c0_i32_0 = arith.constant 0 : i32
    return %arg0, %c0_i32 : i32, i32
  }
  func.func @transform_5(%arg0: i32) -> (i32, i32) {
    %c0_i32 = arith.constant 0 : i32
    %c0_i32_0 = arith.constant 0 : i32
    return %arg0, %c0_i32 : i32, i32
  }
}

</mosaic_0001>

<llo_original>
// kernel: tpu_custom_call.1
$region0: #{tpu_custom_call.1}
  #allocation0 [shape = 'u32[]', space=smem, size = 0x4, offset = 0x4, fixed_abs, tag = 'smem constant byte address 0x4 - core index']
  #allocation1 [shape = 'u32[144,128]{1,0:T(1,128)}', space=vmem, size = 0x12000, scoped, tag = 'internal scratch']
  %s0 = inlined_call_operand.hbm [shape: bf16[256,128], index: 0, kind: input, shape index: {}]
  %s1 = inlined_call_operand.hbm [shape: bf16[128,128], index: 1, kind: input, shape index: {}]
  %s2 = inlined_call_operand.hbm [shape: bf16[128,128], index: 2, kind: input, shape index: {}]
  %s3 = inlined_call_operand.vmem [shape: f32[1,128], index: 3, kind: input, shape index: {}]
  %s4 = inlined_call_operand.hbm [shape: f32[256,128], index: 4, kind: output, shape index: {0}]
  %s5 = inlined_call_operand.hbm [shape: bf16[256,128], index: 5, kind: output, shape index: {1}]
  %6 = xla_tuple %s4, %s5
  %s7 = sld [smem:[#allocation0]]
  $region69: #{tpu_custom_call.1} parent=0
    _
  %s9 = ssub.s32 1, %s7
  %s10 = scalar_select 0, %s9, %s7
  $region1: #{tpu_custom_call.1} parent=0
    #allocation2 [shape = 'u8[65536]{0}', space=vmem, size = 0x10000, scoped, tag = 'input window, operand 0']
    #allocation3 [shape = 's32[2]{0}', space=sflag, size = 0x8, scoped, tag = 'scoped memory for tpu_custom_call.1']
    #allocation4 [shape = 's32[2]{0}', space=sflag, size = 0x8, scoped, tag = 'scoped memory for tpu_custom_call.1']
    #allocation5 [shape = 'u8[32768]{0}', space=vmem, size = 0x8000, scoped, tag = 'input window, operand 1, single buffered']
    #allocation6 [shape = 's32[1]{0}', space=sflag, size = 0x4, scoped, tag = 'scoped memory for tpu_custom_call.1']
    #allocation7 [shape = 'u8[32768]{0}', space=vmem, size = 0x8000, scoped, tag = 'input window, operand 2, single buffered']
    #allocation8 [shape = 'u8[131072]{0}', space=vmem, size = 0x20000, scoped, tag = 'output window, operand 0']
    #allocation9 [shape = 'u8[65536]{0}', space=vmem, size = 0x10000, scoped, tag = 'output window, operand 1']
    #allocation10 [shape = 's32[2]{0}', space=sflag, size = 0x8, scoped, tag = 'scoped memory for tpu_custom_call.1']
    %11 = vsyncpa [#allocation3], 0
    %s12 = scalar_lea.sflag [#allocation3], 1
    %13 = vsyncpa %s12, 0
    %14 = vsyncpa [#allocation6], 0
    %15 = vsyncpa [#allocation4], 0
    %s16 = scalar_lea.sflag [#allocation4], 1
    %17 = vsyncpa %s16, 0
    %18 = vsyncpa [#allocation10], 0
    %s19 = scalar_lea.sflag [#allocation10], 1
    %20 = vsyncpa %s19, 0
    loop: start=0, step=1, limit=4
    $region2: #{tpu_custom_call.1} parent=1 // loop_pre_header
      _
    $region3: #{tpu_custom_call.1} parent=1 // loop_header
      %s22 = sphi 0, %s26
      %p23 = scmp.ge.s32.totalorder %s22, 4
      %s32 = sphi 0, %s34
      %s35 = sphi 0, %s32
      %s36 = sphi 0, %s35
      %s52 = sphi 0, %s36
      %s56 = sphi 0, %s56
      %s58 = sphi 0, %s56
      %s59 = sphi 0, %s58
      %s73 = sphi 0, %s59
      %s77 = sphi 0, %s77
      %s79 = sphi 0, %s77
      %s80 = sphi 0, %s79
      %s94 = sphi 0, %s80
      %s98 = sphi 0, %s98
      %s100 = sphi 0, %s98
      %s101 = sphi 0, %s100
      %s115 = sphi 0, %s101
      %s121 = sphi 0, %s123
      %s124 = sphi 0, %s121
      %s125 = sphi 0, %s124
      %s141 = sphi 0, %s125
      %s147 = sphi 0, %s149
      %s150 = sphi 0, %s147
      %s151 = sphi 0, %s150
      %s167 = sphi 0, %s151
    $region4: #{tpu_custom_call.1} parent=1 // loop_header_branch
      %25 = sbr.rel (%p23) target = $region8
    $region5: #{tpu_custom_call.1} parent=1 // loop_body
      %s27 = ssub.s32 %s22, 1
      %s28 = ssub.s32 %s22, 2
      %s29 = sadd.s32 %s22, 1
      %s30 = ssub.s32 %s22, %s29
      %p31 = scmp.eq.s32.totalorder %s30, 0
      %s33 = sadd.s32 %s32, 1
      %s34 = scalar_select %p31, %s32, %s33
      %p37 = pneg %p31
      %p38 = scmp.eq.s32.totalorder %s22, 1
      %p39 = por %p37, %p38
      %p40 = scmp.ne.s32.totalorder %s32, %s35
      %p41 = scmp.eq.s32.totalorder %s22, 0
      %p42 = por %p40, %p41
      %p43 = scmp.ne.s32.totalorder %s32, %s35
      %p44 = scmp.eq.s32.totalorder %s27, 1
      %p45 = por %p43, %p44
      %p46 = scmp.ne.s32.totalorder %s35, %s36
      %p47 = scmp.eq.s32.totalorder %s27, 0
      %p48 = por %p46, %p47
      %p49 = scmp.ne.s32.totalorder %s35, %s36
      %p50 = scmp.eq.s32.totalorder %s28, 1
      %p51 = por %p49, %p50
      %p53 = scmp.ne.s32.totalorder %s36, %s52
      %p54 = scmp.eq.s32.totalorder %s28, 0
      %p55 = por %p53, %p54
      %s57 = sadd.s32 %s56, 1
      %p60 = scmp.eq.s32.totalorder %s22, 1
      %p61 = scmp.ne.s32.totalorder %s56, %s58
      %p62 = scmp.eq.s32.totalorder %s22, 0
      %p63 = por %p61, %p62
      %p64 = scmp.ne.s32.totalorder %s56, %s58
      %p65 = scmp.eq.s32.totalorder %s27, 1
      %p66 = por %p64, %p65
      %p67 = scmp.ne.s32.totalorder %s58, %s59
      %p68 = scmp.eq.s32.totalorder %s27, 0
      %p69 = por %p67, %p68
      %p70 = scmp.ne.s32.totalorder %s58, %s59
      %p71 = scmp.eq.s32.totalorder %s28, 1
      %p72 = por %p70, %p71
      %p74 = scmp.ne.s32.totalorder %s59, %s73
      %p75 = scmp.eq.s32.totalorder %s28, 0
      %p76 = por %p74, %p75
      %s78 = sadd.s32 %s77, 1
      %p81 = scmp.eq.s32.totalorder %s22, 1
      %p82 = scmp.ne.s32.totalorder %s77, %s79
      %p83 = scmp.eq.s32.totalorder %s22, 0
      %p84 = por %p82, %p83
      %p85 = scmp.ne.s32.totalorder %s77, %s79
      %p86 = scmp.eq.s32.totalorder %s27, 1
      %p87 = por %p85, %p86
      %p88 = scmp.ne.s32.totalorder %s79, %s80
      %p89 = scmp.eq.s32.totalorder %s27, 0
      %p90 = por %p88, %p89
      %p91 = scmp.ne.s32.totalorder %s79, %s80
      %p92 = scmp.eq.s32.totalorder %s28, 1
      %p93 = por %p91, %p92
      %p95 = scmp.ne.s32.totalorder %s80, %s94
      %p96 = scmp.eq.s32.totalorder %s28, 0
      %p97 = por %p95, %p96
      %s99 = sadd.s32 %s98, 1
      %p102 = scmp.eq.s32.totalorder %s22, 1
      %p103 = scmp.ne.s32.totalorder %s98, %s100
      %p104 = scmp.eq.s32.totalorder %s22, 0
      %p105 = por %p103, %p104
      %p106 = scmp.ne.s32.totalorder %s98, %s100
      %p107 = scmp.eq.s32.totalorder %s27, 1
      %p108 = por %p106, %p107
      %p109 = scmp.ne.s32.totalorder %s100, %s101
      %p110 = scmp.eq.s32.totalorder %s27, 0
      %p111 = por %p109, %p110
      %p112 = scmp.ne.s32.totalorder %s100, %s101
      %p113 = scmp.eq.s32.totalorder %s28, 1
      %p114 = por %p112, %p113
      %p116 = scmp.ne.s32.totalorder %s101, %s115
      %p117 = scmp.eq.s32.totalorder %s28, 0
      %p118 = por %p116, %p117
      %s119 = ssub.s32 %s22, %s29
      %p120 = scmp.eq.s32.totalorder %s119, 0
      %s122 = sadd.s32 %s121, 1
      %s123 = scalar_select %p120, %s121, %s122
      %p126 = pneg %p120
      %p127 = scmp.eq.s32.totalorder %s22, 1
      %p128 = por %p126, %p127
      %p129 = scmp.ne.s32.totalorder %s121, %s124
      %p130 = scmp.eq.s32.totalorder %s22, 0
      %p131 = por %p129, %p130
      %p132 = scmp.ne.s32.totalorder %s121, %s124
      %p133 = scmp.eq.s32.totalorder %s27, 1
      %p134 = por %p132, %p133
      %p135 = scmp.ne.s32.totalorder %s124, %s125
      %p136 = scmp.eq.s32.totalorder %s27, 0
      %p137 = por %p135, %p136
      %p138 = scmp.ne.s32.totalorder %s124, %s125
      %p139 = scmp.eq.s32.totalorder %s28, 1
      %p140 = por %p138, %p139
      %p142 = scmp.ne.s32.totalorder %s125, %s141
      %p143 = scmp.eq.s32.totalorder %s28, 0
      %p144 = por %p142, %p143
      %s145 = ssub.s32 %s22, %s29
      %p146 = scmp.eq.s32.totalorder %s145, 0
      %s148 = sadd.s32 %s147, 1
      %s149 = scalar_select %p146, %s147, %s148
      %p152 = pneg %p146
      %p153 = scmp.eq.s32.totalorder %s22, 1
      %p154 = por %p152, %p153
      %p155 = scmp.ne.s32.totalorder %s147, %s150
      %p156 = scmp.eq.s32.totalorder %s22, 0
      %p157 = por %p155, %p156
      %p158 = scmp.ne.s32.totalorder %s147, %s150
      %p159 = scmp.eq.s32.totalorder %s27, 1
      %p160 = por %p158, %p159
      %p161 = scmp.ne.s32.totalorder %s150, %s151
      %p162 = scmp.eq.s32.totalorder %s27, 0
      %p163 = por %p161, %p162
      %p164 = scmp.ne.s32.totalorder %s150, %s151
      %p165 = scmp.eq.s32.totalorder %s28, 1
      %p166 = por %p164, %p165
      %p168 = scmp.ne.s32.totalorder %s151, %s167
      %p169 = scmp.eq.s32.totalorder %s28, 0
      %p170 = por %p168, %p169
      %p171 = scmp.le.s32.totalorder 1, %s22
      %p172 = scmp.lt.s32.totalorder %s22, 3
      %p173 = pnand %p171, %p172
      %p174 = pneg %p173
      // Predicated region
      $region9: #{tpu_custom_call.1} parent=5 // pred_check
        _
      $region10: #{tpu_custom_call.1} parent=5 // pred_check_branch
        %176 = sbr.rel (%p173) target = $region12
      $region11: #{tpu_custom_call.1} parent=5 // pred_region
        %s177 = ssub.s32 %s22, 1
        // Predicated region
        $region13: #{tpu_custom_call.1} parent=11 // pred_check
          %p178 = pneg %p69
        $region14: #{tpu_custom_call.1} parent=11 // pred_check_branch
          %180 = sbr.rel (%p178) target = $region16
        $region15: #{tpu_custom_call.1} parent=11 // pred_region
          %s182 = ssub.s32 1024, 1024
          %183 = vsyncadd [#allocation6], %s182
          %s184 = sshll.u32 [#allocation5], 4
          %s185 = int_to_ptr.vmem [resolvable:$true] %s184
          %190 = dma.hbm_to_vmem [thread:$0]  %s1, 1024, %s185, [#allocation6], 64, 64, 4
        $region16: #{tpu_custom_call.1} parent=11 // pred_fallthru
          _
        // Predicated region
        $region17: #{tpu_custom_call.1} parent=11 // pred_check
          %p191 = pneg %p90
        $region18: #{tpu_custom_call.1} parent=11 // pred_check_branch
          %193 = sbr.rel (%p191) target = $region20
        $region19: #{tpu_custom_call.1} parent=11 // pred_region
          %s195 = ssub.s32 1024, 1024
          %196 = vsyncadd [#allocation6], %s195
          %s197 = sshll.u32 [#allocation7], 4
          %s198 = int_to_ptr.vmem [resolvable:$true] %s197
          %203 = dma.hbm_to_vmem [thread:$0]  %s2, 1024, %s198, [#allocation6], 64, 64, 4
        $region20: #{tpu_custom_call.1} parent=11 // pred_fallthru
          _
        // Predicated region
        $region21: #{tpu_custom_call.1} parent=11 // pred_check
          %p204 = pneg %p111
        $region22: #{tpu_custom_call.1} parent=11 // pred_check_branch
          %206 = sbr.rel (%p204) target = $region24
        $region23: #{tpu_custom_call.1} parent=11 // pred_region
          _
        $region24: #{tpu_custom_call.1} parent=11 // pred_fallthru
          _
      $region12: #{tpu_custom_call.1} parent=5 // pred_fallthru
        _
      %p207 = scmp.lt.s32.totalorder %s22, 2
      // Predicated region
      $region25: #{tpu_custom_call.1} parent=5 // pred_check
        %p208 = pneg %p207
      $region26: #{tpu_custom_call.1} parent=5 // pred_check_branch
        %210 = sbr.rel (%p208) target = $region28
      $region27: #{tpu_custom_call.1} parent=5 // pred_region
        // Predicated region
        $region29: #{tpu_custom_call.1} parent=27 // pred_check
          %p211 = pneg %p42
        $region30: #{tpu_custom_call.1} parent=27 // pred_check_branch
          %213 = sbr.rel (%p211) target = $region32
        $region31: #{tpu_custom_call.1} parent=27 // pred_region
          %s214 = sand.u32 %s32, 1
          %s215 = scalar_lea.sflag [#allocation3], %s214
          %s216 = sand.u32 %s32, 1
          %s217 = smul.addr %s216, 64
          %s218 = scalar_lea.vmem [#allocation2], %s217
          %s219 = smul.u32 16, %s22
          %s221 = ssub.s32 1024, 1024
          %222 = vsyncadd %s215, %s221
          %s223 = smul.addr %s219, 64
          %s224 = scalar_lea.hbm %s0, %s223
          %s225 = sshll.u32 %s218, 4
          %s226 = int_to_ptr.vmem [resolvable:$true] %s225
          %231 = dma.hbm_to_vmem [thread:$0]  %s224, 1024, %s226, %s215, 64, 64, 4
        $region32: #{tpu_custom_call.1} parent=27 // pred_fallthru
          _
      $region28: #{tpu_custom_call.1} parent=5 // pred_fallthru
        _
      %p232 = scmp.le.s32.totalorder 1, %s22
      %p233 = scmp.lt.s32.totalorder %s22, 3
      %p234 = pnand %p232, %p233
      %p235 = pneg %p234
      // Predicated region
      $region33: #{tpu_custom_call.1} parent=5 // pred_check
        _
      $region34: #{tpu_custom_call.1} parent=5 // pred_check_branch
        %237 = sbr.rel (%p234) target = $region36
      $region35: #{tpu_custom_call.1} parent=5 // pred_region
        %s238 = ssub.s32 %s22, 1
        %s239 = sand.u32 %s35, 1
        %s240 = scalar_lea.sflag [#allocation3], %s239
        %s241 = sand.u32 %s35, 1
        %s242 = smul.addr %s241, 64
        %s243 = scalar_lea.vmem [#allocation2], %s242
        // Predicated region
        $region37: #{tpu_custom_call.1} parent=35 // pred_check
          %p244 = pneg %p48
        $region38: #{tpu_custom_call.1} parent=35 // pred_check_branch
          %246 = sbr.rel (%p244) target = $region40
        $region39: #{tpu_custom_call.1} parent=35 // pred_region
          %247 = dma.done %s240, 1024
        $region40: #{tpu_custom_call.1} parent=35 // pred_fallthru
          _
        // Predicated region
        $region41: #{tpu_custom_call.1} parent=35 // pred_check
          %p248 = pneg %p69
        $region42: #{tpu_custom_call.1} parent=35 // pred_check_branch
          %250 = sbr.rel (%p248) target = $region44
        $region43: #{tpu_custom_call.1} parent=35 // pred_region
          %251 = dma.done [#allocation6], 1024
        $region44: #{tpu_custom_call.1} parent=35 // pred_fallthru
          _
        // Predicated region
        $region45: #{tpu_custom_call.1} parent=35 // pred_check
          %p252 = pneg %p90
        $region46: #{tpu_custom_call.1} parent=35 // pred_check_branch
          %254 = sbr.rel (%p252) target = $region48
        $region47: #{tpu_custom_call.1} parent=35 // pred_region
          %255 = dma.done [#allocation6], 1024
        $region48: #{tpu_custom_call.1} parent=35 // pred_fallthru
          _
        %s256 = sand.u32 %s35, 1
        %s257 = scalar_lea.sflag [#allocation3], %s256
        %s258 = sand.u32 %s35, 1
        %s259 = smul.addr %s258, 64
        %s260 = scalar_lea.vmem [#allocation2], %s259
        %p261 = pneg %p48
        %p262 = pneg %p45
        %p263 = pneg %p69
        %p264 = pneg %p66
        %p265 = pneg %p90
        %p266 = pneg %p87
        %p267 = pneg %p111
        %p268 = pneg %p108
        %p269 = pneg %p137
        %p270 = pneg %p134
        %s271 = sand.u32 %s124, 1
        %s272 = scalar_lea.sflag [#allocation4], %s271
        %s273 = sand.u32 %s124, 1
        %s274 = smul.addr %s273, 128
        %s275 = scalar_lea.vmem [#allocation8], %s274
        %p276 = pneg %p163
        %p277 = pneg %p160
        %s278 = sand.u32 %s150, 1
        %s279 = scalar_lea.sflag [#allocation10], %s278
        %s280 = sand.u32 %s150, 1
        %s281 = smul.addr %s280, 64
        %s282 = scalar_lea.vmem [#allocation9], %s281
        %s283 = smul.u32 16, %s27
        %s284 = smul.u32 16, %s27
        %s285 = smul.u32 16, %s27
        %v287 = vld [vmem:[%s243] sm:$0xf]
        %v288 = vld [vmem:[%s243 + $0x4] sm:$0xf]
        %v289 = vld [vmem:[%s243 + $0x8] sm:$0xf]
        %v290 = vld [vmem:[%s243 + $0xc] sm:$0xf]
        %v291 = vld [vmem:[%s243 + $0x10] sm:$0xf]
        %v292 = vld [vmem:[%s243 + $0x14] sm:$0xf]
        %v293 = vld [vmem:[%s243 + $0x18] sm:$0xf]
        %v294 = vld [vmem:[%s243 + $0x1c] sm:$0xf]
        %v295 = vld [vmem:[%s243 + $0x20] sm:$0xf]
        %v296 = vld [vmem:[%s243 + $0x24] sm:$0xf]
        %v297 = vld [vmem:[%s243 + $0x28] sm:$0xf]
        %v298 = vld [vmem:[%s243 + $0x2c] sm:$0xf]
        %v299 = vld [vmem:[%s243 + $0x30] sm:$0xf]
        %v300 = vld [vmem:[%s243 + $0x34] sm:$0xf]
        %v301 = vld [vmem:[%s243 + $0x38] sm:$0xf]
        %v302 = vld [vmem:[%s243 + $0x3c] sm:$0xf]
        %v303 = vld [vmem:[#allocation5] sm:$0xf]
        %v304 = vld [vmem:[#allocation5 + $0x4] sm:$0xf]
        %v305 = vld [vmem:[#allocation5 + $0x8] sm:$0xf]
        %v306 = vld [vmem:[#allocation5 + $0xc] sm:$0xf]
        %v307 = vld [vmem:[#allocation5 + $0x10] sm:$0xf]
        %v308 = vld [vmem:[#allocation5 + $0x14] sm:$0xf]
        %v309 = vld [vmem:[#allocation5 + $0x18] sm:$0xf]
        %v310 = vld [vmem:[#allocation5 + $0x1c] sm:$0xf]
        %v311 = vld [vmem:[#allocation5 + $0x20] sm:$0xf]
        %v312 = vld [vmem:[#allocation5 + $0x24] sm:$0xf]
        %v313 = vld [vmem:[#allocation5 + $0x28] sm:$0xf]
        %v314 = vld [vmem:[#allocation5 + $0x2c] sm:$0xf]
        %v315 = vld [vmem:[#allocation5 + $0x30] sm:$0xf]
        %v316 = vld [vmem:[#allocation5 + $0x34] sm:$0xf]
        %v317 = vld [vmem:[#allocation5 + $0x38] sm:$0xf]
        %v318 = vld [vmem:[#allocation5 + $0x3c] sm:$0xf]
        %v319 = vld [vmem:[%s3] sm:$0x1]
        %v321 = vlaneseq
        %v322 = vshrl.u32 %v321, 7
        %v323 = vsub.s32 0, %v322
        %v324 = vrot.slane %v319, %v323
        %v342 = vunpack.c.l.b16 %v287
        %v343 = vunpack.c.l.b16 %v288
        %v344 = vunpack.c.l.b16 %v289
        %v345 = vunpack.c.l.b16 %v290
        %v346 = vunpack.c.l.b16 %v291
        %v347 = vunpack.c.l.b16 %v292
        %v348 = vunpack.c.l.b16 %v293
        %v349 = vunpack.c.l.b16 %v294
        %v350 = vunpack.c.l.b16 %v295
        %v351 = vunpack.c.l.b16 %v296
        %v352 = vunpack.c.l.b16 %v297
        %v353 = vunpack.c.l.b16 %v298
        %v354 = vunpack.c.l.b16 %v299
        %v355 = vunpack.c.l.b16 %v300
        %v356 = vunpack.c.l.b16 %v301
        %v357 = vunpack.c.l.b16 %v302
        %v358 = vpack.c.b16 %v343, %v342
        %v359 = vpack.c.b16 %v345, %v344
        %v360 = vpack.c.b16 %v347, %v346
        %v361 = vpack.c.b16 %v349, %v348
        %v362 = vpack.c.b16 %v351, %v350
        %v363 = vpack.c.b16 %v353, %v352
        %v364 = vpack.c.b16 %v355, %v354
        %v365 = vpack.c.b16 %v357, %v356
        %v390 = vunpack.c.l.b16 %v303
        %v391 = vunpack.c.l.b16 %v304
        %v392 = vunpack.c.l.b16 %v305
        %v393 = vunpack.c.l.b16 %v306
        %v394 = vunpack.c.l.b16 %v307
        %v395 = vunpack.c.l.b16 %v308
        %v396 = vunpack.c.l.b16 %v309
        %v397 = vunpack.c.l.b16 %v310
        %v398 = vunpack.c.l.b16 %v311
        %v399 = vunpack.c.l.b16 %v312
        %v400 = vunpack.c.l.b16 %v313
        %v401 = vunpack.c.l.b16 %v314
        %v402 = vunpack.c.l.b16 %v315
        %v403 = vunpack.c.l.b16 %v316
        %v404 = vunpack.c.l.b16 %v317
        %v405 = vunpack.c.l.b16 %v318
        %v406 = vpack.c.b16 %v391, %v390
        %v407 = vpack.c.b16 %v393, %v392
        %v408 = vpack.c.b16 %v395, %v394
        %v409 = vpack.c.b16 %v397, %v396
        %v410 = vpack.c.b16 %v399, %v398
        %v411 = vpack.c.b16 %v401, %v400
        %v412 = vpack.c.b16 %v403, %v402
        %v413 = vpack.c.b16 %v405, %v404
        %422 = vmatprep.subr.bf16.mxu0 0
        %423 = vmatpush1.bf16.msra.mxu0 %v406
        %424 = vmatprep.subr.bf16.mxu0 0
        %425 = vmatpush1.bf16.msra.mxu0 %v407
        %426 = vmatprep.subr.bf16.mxu0 0
        %427 = vmatpush1.bf16.msra.mxu0 %v408
        %428 = vmatprep.subr.bf16.mxu0 0
        %429 = vmatpush1.bf16.msra.mxu0 %v409
        %430 = vmatprep.subr.bf16.mxu0 0
        %431 = vmatpush1.bf16.msra.mxu0 %v410
        %432 = vmatprep.subr.bf16.mxu0 0
        %433 = vmatpush1.bf16.msra.mxu0 %v411
        %434 = vmatprep.subr.bf16.mxu0 0
        %435 = vmatpush1.bf16.msra.mxu0 %v412
        %436 = vmatprep.subr.bf16.mxu0 0
        %437 = vmatpush1.bf16.msra.mxu0 %v413
        %438 = vmatprep.subr.bf16.mxu0 0
        %439 = vmatpush1.bf16.msra.mxu0 0
        %440 = vmatprep.subr.bf16.mxu0 0
        %441 = vmatpush1.bf16.msra.mxu0 0
        %442 = vmatprep.subr.bf16.mxu0 0
        %443 = vmatpush1.bf16.msra.mxu0 0
        %444 = vmatprep.subr.bf16.mxu0 0
        %445 = vmatpush1.bf16.msra.mxu0 0
        %446 = vmatprep.subr.bf16.mxu0 0
        %447 = vmatpush1.bf16.msra.mxu0 0
        %448 = vmatprep.subr.bf16.mxu0 0
        %449 = vmatpush1.bf16.msra.mxu0 0
        %450 = vmatprep.subr.bf16.mxu0 0
        %451 = vmatpush1.bf16.msra.mxu0 0
        %452 = vmatprep.subr.bf16.mxu0 0
        %453 = vmatpush1.bf16.msra.mxu0 0
        %454 = vmatprep.mubr.bf16.mxu0 0
        %455 = vmatmul.mubr.bf16.gmra.mrb[0].mxu0 %v358
        %v456 = vpop.f32.mrb[0].mxu0
        %v457 = vadd.f32 %v324, %v456
        %v458 = vpop.f32.mrb[0].mxu0
        %v459 = vpop.f32.mrb[0].mxu0
        %v460 = vadd.f32 %v324, %v459
        %v461 = vpop.f32.mrb[0].mxu0
        %462 = vmatprep.mubr.bf16.mxu0 0
        %463 = vmatmul.mubr.bf16.gmra.mrb[0].mxu0 %v359
        %v464 = vpop.f32.mrb[0].mxu0
        %v465 = vadd.f32 %v324, %v464
        %v466 = vpop.f32.mrb[0].mxu0
        %v467 = vpop.f32.mrb[0].mxu0
        %v468 = vadd.f32 %v324, %v467
        %v469 = vpop.f32.mrb[0].mxu0
        %470 = vmatprep.mubr.bf16.mxu0 0
        %471 = vmatmul.mubr.bf16.gmra.mrb[0].mxu0 %v360
        %v472 = vpop.f32.mrb[0].mxu0
        %v473 = vadd.f32 %v324, %v472
        %v474 = vpop.f32.mrb[0].mxu0
        %v475 = vpop.f32.mrb[0].mxu0
        %v476 = vadd.f32 %v324, %v475
        %v477 = vpop.f32.mrb[0].mxu0
        %478 = vmatprep.mubr.bf16.mxu0 0
        %479 = vmatmul.mubr.bf16.gmra.mrb[0].mxu0 %v361
        %v480 = vpop.f32.mrb[0].mxu0
        %v481 = vadd.f32 %v324, %v480
        %v482 = vpop.f32.mrb[0].mxu0
        %v483 = vpop.f32.mrb[0].mxu0
        %v484 = vadd.f32 %v324, %v483
        %v485 = vpop.f32.mrb[0].mxu0
        %486 = vmatprep.mubr.bf16.mxu0 0
        %487 = vmatmul.mubr.bf16.gmra.mrb[0].mxu0 %v362
        %v488 = vpop.f32.mrb[0].mxu0
        %v489 = vadd.f32 %v324, %v488
        %v490 = vpop.f32.mrb[0].mxu0
        %v491 = vpop.f32.mrb[0].mxu0
        %v492 = vadd.f32 %v324, %v491
        %v493 = vpop.f32.mrb[0].mxu0
        %494 = vmatprep.mubr.bf16.mxu0 0
        %495 = vmatmul.mubr.bf16.gmra.mrb[0].mxu0 %v363
        %v496 = vpop.f32.mrb[0].mxu0
        %v497 = vadd.f32 %v324, %v496
        %v498 = vpop.f32.mrb[0].mxu0
        %v499 = vpop.f32.mrb[0].mxu0
        %v500 = vadd.f32 %v324, %v499
        %v501 = vpop.f32.mrb[0].mxu0
        %502 = vmatprep.mubr.bf16.mxu0 0
        %503 = vmatmul.mubr.bf16.gmra.mrb[0].mxu0 %v364
        %v504 = vpop.f32.mrb[0].mxu0
        %v505 = vadd.f32 %v324, %v504
        %v506 = vpop.f32.mrb[0].mxu0
        %v507 = vpop.f32.mrb[0].mxu0
        %v508 = vadd.f32 %v324, %v507
        %v509 = vpop.f32.mrb[0].mxu0
        %510 = vmatprep.mubr.bf16.mxu0 0
        %511 = vmatmul.mubr.bf16.gmra.mrb[0].mxu0 %v365
        %v512 = vpop.f32.mrb[0].mxu0
        %v513 = vadd.f32 %v324, %v512
        %v514 = vpop.f32.mrb[0].mxu0
        %v515 = vpop.f32.mrb[0].mxu0
        %v516 = vadd.f32 %v324, %v515
        %v517 = vpop.f32.mrb[0].mxu0
        %518 = vdwg.mxu0
        %v519 = vld [vmem:[#allocation7] sm:$0xf]
        %v520 = vld [vmem:[#allocation7 + $0x4] sm:$0xf]
        %v521 = vld [vmem:[#allocation7 + $0x8] sm:$0xf]
        %v522 = vld [vmem:[#allocation7 + $0xc] sm:$0xf]
        %v523 = vld [vmem:[#allocation7 + $0x10] sm:$0xf]
        %v524 = vld [vmem:[#allocation7 + $0x14] sm:$0xf]
        %v525 = vld [vmem:[#allocation7 + $0x18] sm:$0xf]
        %v526 = vld [vmem:[#allocation7 + $0x1c] sm:$0xf]
        %v527 = vld [vmem:[#allocation7 + $0x20] sm:$0xf]
        %v528 = vld [vmem:[#allocation7 + $0x24] sm:$0xf]
        %v529 = vld [vmem:[#allocation7 + $0x28] sm:$0xf]
        %v530 = vld [vmem:[#allocation7 + $0x2c] sm:$0xf]
        %v531 = vld [vmem:[#allocation7 + $0x30] sm:$0xf]
        %v532 = vld [vmem:[#allocation7 + $0x34] sm:$0xf]
        %v533 = vld [vmem:[#allocation7 + $0x38] sm:$0xf]
        %v534 = vld [vmem:[#allocation7 + $0x3c] sm:$0xf]
        %v551 = vunpack.c.l.b16 %v519
        %v552 = vunpack.c.l.b16 %v520
        %v553 = vunpack.c.l.b16 %v521
        %v554 = vunpack.c.l.b16 %v522
        %v555 = vunpack.c.l.b16 %v523
        %v556 = vunpack.c.l.b16 %v524
        %v557 = vunpack.c.l.b16 %v525
        %v558 = vunpack.c.l.b16 %v526
        %v559 = vunpack.c.l.b16 %v527
        %v560 = vunpack.c.l.b16 %v528
        %v561 = vunpack.c.l.b16 %v529
        %v562 = vunpack.c.l.b16 %v530
        %v563 = vunpack.c.l.b16 %v531
        %v564 = vunpack.c.l.b16 %v532
        %v565 = vunpack.c.l.b16 %v533
        %v566 = vunpack.c.l.b16 %v534
        %v567 = vpack.c.b16 %v552, %v551
        %v568 = vpack.c.b16 %v554, %v553
        %v569 = vpack.c.b16 %v556, %v555
        %v570 = vpack.c.b16 %v558, %v557
        %v571 = vpack.c.b16 %v560, %v559
        %v572 = vpack.c.b16 %v562, %v561
        %v573 = vpack.c.b16 %v564, %v563
        %v574 = vpack.c.b16 %v566, %v565
        %583 = vmatprep.subr.bf16.mxu0 0
        %584 = vmatpush1.bf16.msra.mxu0 %v567
        %585 = vmatprep.subr.bf16.mxu0 0
        %586 = vmatpush1.bf16.msra.mxu0 %v568
        %587 = vmatprep.subr.bf16.mxu0 0
        %588 = vmatpush1.bf16.msra.mxu0 %v569
        %589 = vmatprep.subr.bf16.mxu0 0
        %590 = vmatpush1.bf16.msra.mxu0 %v570
        %591 = vmatprep.subr.bf16.mxu0 0
        %592 = vmatpush1.bf16.msra.mxu0 %v571
        %593 = vmatprep.subr.bf16.mxu0 0
        %594 = vmatpush1.bf16.msra.mxu0 %v572
        %595 = vmatprep.subr.bf16.mxu0 0
        %596 = vmatpush1.bf16.msra.mxu0 %v573
        %597 = vmatprep.subr.bf16.mxu0 0
        %598 = vmatpush1.bf16.msra.mxu0 %v574
        %599 = vmatprep.subr.bf16.mxu0 0
        %600 = vmatpush1.bf16.msra.mxu0 0
        %601 = vmatprep.subr.bf16.mxu0 0
        %602 = vmatpush1.bf16.msra.mxu0 0
        %603 = vmatprep.subr.bf16.mxu0 0
        %604 = vmatpush1.bf16.msra.mxu0 0
        %605 = vmatprep.subr.bf16.mxu0 0
        %606 = vmatpush1.bf16.msra.mxu0 0
        %607 = vmatprep.subr.bf16.mxu0 0
        %608 = vmatpush1.bf16.msra.mxu0 0
        %609 = vmatprep.subr.bf16.mxu0 0
        %610 = vmatpush1.bf16.msra.mxu0 0
        %611 = vmatprep.subr.bf16.mxu0 0
        %612 = vmatpush1.bf16.msra.mxu0 0
        %613 = vmatprep.subr.bf16.mxu0 0
        %614 = vmatpush1.bf16.msra.mxu0 0
        %615 = vmatprep.mubr.bf16.mxu0 0
        %616 = vmatmul.mubr.bf16.gmra.mrb[0].mxu0 %v358
        %v617 = vpop.f32.mrb[0].mxu0
        %v618 = vadd.f32 0.0, %v617
        %v619 = vpop.f32.mrb[0].mxu0
        %v620 = vpop.f32.mrb[0].mxu0
        %v621 = vadd.f32 0.0, %v620
        %v622 = vpop.f32.mrb[0].mxu0
        %623 = vmatprep.mubr.bf16.mxu0 0
        %624 = vmatmul.mubr.bf16.gmra.mrb[0].mxu0 %v359
        %v625 = vpop.f32.mrb[0].mxu0
        %v626 = vadd.f32 0.0, %v625
        %v627 = vpop.f32.mrb[0].mxu0
        %v628 = vpop.f32.mrb[0].mxu0
        %v629 = vadd.f32 0.0, %v628
        %v630 = vpop.f32.mrb[0].mxu0
        %631 = vmatprep.mubr.bf16.mxu0 0
        %632 = vmatmul.mubr.bf16.gmra.mrb[0].mxu0 %v360
        %v633 = vpop.f32.mrb[0].mxu0
        %v634 = vadd.f32 0.0, %v633
        %v635 = vpop.f32.mrb[0].mxu0
        %v636 = vpop.f32.mrb[0].mxu0
        %v637 = vadd.f32 0.0, %v636
        %v638 = vpop.f32.mrb[0].mxu0
        %639 = vmatprep.mubr.bf16.mxu0 0
        %640 = vmatmul.mubr.bf16.gmra.mrb[0].mxu0 %v361
        %v641 = vpop.f32.mrb[0].mxu0
        %v642 = vadd.f32 0.0, %v641
        %v643 = vpop.f32.mrb[0].mxu0
        %v644 = vpop.f32.mrb[0].mxu0
        %v645 = vadd.f32 0.0, %v644
        %v646 = vpop.f32.mrb[0].mxu0
        %647 = vmatprep.mubr.bf16.mxu0 0
        %648 = vmatmul.mubr.bf16.gmra.mrb[0].mxu0 %v362
        %v649 = vpop.f32.mrb[0].mxu0
        %v650 = vadd.f32 0.0, %v649
        %v651 = vpop.f32.mrb[0].mxu0
        %v652 = vpop.f32.mrb[0].mxu0
        %v653 = vadd.f32 0.0, %v652
        %v654 = vpop.f32.mrb[0].mxu0
        %655 = vmatprep.mubr.bf16.mxu0 0
        %656 = vmatmul.mubr.bf16.gmra.mrb[0].mxu0 %v363
        %v657 = vpop.f32.mrb[0].mxu0
        %v658 = vadd.f32 0.0, %v657
        %v659 = vpop.f32.mrb[0].mxu0
        %v660 = vpop.f32.mrb[0].mxu0
        %v661 = vadd.f32 0.0, %v660
        %v662 = vpop.f32.mrb[0].mxu0
        %663 = vmatprep.mubr.bf16.mxu0 0
        %664 = vmatmul.mubr.bf16.gmra.mrb[0].mxu0 %v364
        %v665 = vpop.f32.mrb[0].mxu0
        %v666 = vadd.f32 0.0, %v665
        %v667 = vpop.f32.mrb[0].mxu0
        %v668 = vpop.f32.mrb[0].mxu0
        %v669 = vadd.f32 0.0, %v668
        %v670 = vpop.f32.mrb[0].mxu0
        %671 = vmatprep.mubr.bf16.mxu0 0
        %672 = vmatmul.mubr.bf16.gmra.mrb[0].mxu0 %v365
        %v673 = vpop.f32.mrb[0].mxu0
        %v674 = vadd.f32 0.0, %v673
        %v675 = vpop.f32.mrb[0].mxu0
        %v676 = vpop.f32.mrb[0].mxu0
        %v677 = vadd.f32 0.0, %v676
        %v678 = vpop.f32.mrb[0].mxu0
        %679 = vdwg.mxu0
        %680 = vst [vmem:[%s275] sm:$0xff] %v457
        %681 = vst [vmem:[%s275 + $0x8] sm:$0xff] %v460
        %682 = vst [vmem:[%s275 + $0x10] sm:$0xff] %v465
        %683 = vst [vmem:[%s275 + $0x18] sm:$0xff] %v468
        %684 = vst [vmem:[%s275 + $0x20] sm:$0xff] %v473
        %685 = vst [vmem:[%s275 + $0x28] sm:$0xff] %v476
        %686 = vst [vmem:[%s275 + $0x30] sm:$0xff] %v481
        %687 = vst [vmem:[%s275 + $0x38] sm:$0xff] %v484
        %688 = vst [vmem:[%s275 + $0x40] sm:$0xff] %v489
        %689 = vst [vmem:[%s275 + $0x48] sm:$0xff] %v492
        %690 = vst [vmem:[%s275 + $0x50] sm:$0xff] %v497
        %691 = vst [vmem:[%s275 + $0x58] sm:$0xff] %v500
        %692 = vst [vmem:[%s275 + $0x60] sm:$0xff] %v505
        %693 = vst [vmem:[%s275 + $0x68] sm:$0xff] %v508
        %694 = vst [vmem:[%s275 + $0x70] sm:$0xff] %v513
        %695 = vst [vmem:[%s275 + $0x78] sm:$0xff] %v516
        %v696 = vpack.c.bf16 %v621, %v618
        %v697 = vpack.c.bf16 %v629, %v626
        %v698 = vpack.c.bf16 %v637, %v634
        %v699 = vpack.c.bf16 %v645, %v642
        %v700 = vpack.c.bf16 %v653, %v650
        %v701 = vpack.c.bf16 %v661, %v658
        %v702 = vpack.c.bf16 %v669, %v666
        %v703 = vpack.c.bf16 %v677, %v674
        %v712 = vunpack.c.l.b16 %v696
        %v713 = vunpack.c.h.b16 %v696
        %v714 = vunpack.c.l.b16 %v697
        %v715 = vunpack.c.h.b16 %v697
        %v716 = vunpack.c.l.b16 %v698
        %v717 = vunpack.c.h.b16 %v698
        %v718 = vunpack.c.l.b16 %v699
        %v719 = vunpack.c.h.b16 %v699
        %v720 = vunpack.c.l.b16 %v700
        %v721 = vunpack.c.h.b16 %v700
        %v722 = vunpack.c.l.b16 %v701
        %v723 = vunpack.c.h.b16 %v701
        %v724 = vunpack.c.l.b16 %v702
        %v725 = vunpack.c.h.b16 %v702
        %v726 = vunpack.c.l.b16 %v703
        %v727 = vunpack.c.h.b16 %v703
        %v728 = vpack.c.b16 %v712, %v712
        %v729 = vpack.c.b16 %v713, %v713
        %v730 = vpack.c.b16 %v714, %v714
        %v731 = vpack.c.b16 %v715, %v715
        %v732 = vpack.c.b16 %v716, %v716
        %v733 = vpack.c.b16 %v717, %v717
        %v734 = vpack.c.b16 %v718, %v718
        %v735 = vpack.c.b16 %v719, %v719
        %v736 = vpack.c.b16 %v720, %v720
        %v737 = vpack.c.b16 %v721, %v721
        %v738 = vpack.c.b16 %v722, %v722
        %v739 = vpack.c.b16 %v723, %v723
        %v740 = vpack.c.b16 %v724, %v724
        %v741 = vpack.c.b16 %v725, %v725
        %v742 = vpack.c.b16 %v726, %v726
        %v743 = vpack.c.b16 %v727, %v727
        %760 = vst [vmem:[%s282] sm:$0xf] %v728
        %761 = vst [vmem:[%s282 + $0x4] sm:$0xf] %v729
        %762 = vst [vmem:[%s282 + $0x8] sm:$0xf] %v730
        %763 = vst [vmem:[%s282 + $0xc] sm:$0xf] %v731
        %764 = vst [vmem:[%s282 + $0x10] sm:$0xf] %v732
        %765 = vst [vmem:[%s282 + $0x14] sm:$0xf] %v733
        %766 = vst [vmem:[%s282 + $0x18] sm:$0xf] %v734
        %767 = vst [vmem:[%s282 + $0x1c] sm:$0xf] %v735
        %768 = vst [vmem:[%s282 + $0x20] sm:$0xf] %v736
        %769 = vst [vmem:[%s282 + $0x24] sm:$0xf] %v737
        %770 = vst [vmem:[%s282 + $0x28] sm:$0xf] %v738
        %771 = vst [vmem:[%s282 + $0x2c] sm:$0xf] %v739
        %772 = vst [vmem:[%s282 + $0x30] sm:$0xf] %v740
        %773 = vst [vmem:[%s282 + $0x34] sm:$0xf] %v741
        %774 = vst [vmem:[%s282 + $0x38] sm:$0xf] %v742
        %775 = vst [vmem:[%s282 + $0x3c] sm:$0xf] %v743
        %s776 = sand.u32 %s124, 1
        %s777 = scalar_lea.sflag [#allocation4], %s776
        %s778 = sand.u32 %s124, 1
        %s779 = smul.addr %s778, 128
        %s780 = scalar_lea.vmem [#allocation8], %s779
        %s781 = sand.u32 %s150, 1
        %s782 = scalar_lea.sflag [#allocation10], %s781
        %s783 = sand.u32 %s150, 1
        %s784 = smul.addr %s783, 64
        %s785 = scalar_lea.vmem [#allocation9], %s784
        // Predicated region
        $region49: #{tpu_custom_call.1} parent=35 // pred_check
          %p786 = pneg %p134
        $region50: #{tpu_custom_call.1} parent=35 // pred_check_branch
          %788 = sbr.rel (%p786) target = $region52
        $region51: #{tpu_custom_call.1} parent=35 // pred_region
          %s789 = smul.u32 16, %s27
          %s791 = ssub.s32 2048, 2048
          %792 = vsyncadd %s777, %s791
          %s793 = smul.addr %s789, 128
          %s794 = scalar_lea.hbm %s4, %s793
          %s795 = sshll.u32 %s780, 4
          %s796 = int_to_ptr.vmem [resolvable:$true] %s795
          %801 = dma.vmem_to_hbm [thread:$0]  %s796, 2048, %s794, %s777, 128, 128, 8
        $region52: #{tpu_custom_call.1} parent=35 // pred_fallthru
          _
        // Predicated region
        $region53: #{tpu_custom_call.1} parent=35 // pred_check
          %p802 = pneg %p160
        $region54: #{tpu_custom_call.1} parent=35 // pred_check_branch
          %804 = sbr.rel (%p802) target = $region56
        $region55: #{tpu_custom_call.1} parent=35 // pred_region
          %s805 = smul.u32 16, %s27
          %s807 = ssub.s32 1024, 1024
          %808 = vsyncadd %s782, %s807
          %s809 = smul.addr %s805, 64
          %s810 = scalar_lea.hbm %s5, %s809
          %s811 = sshll.u32 %s785, 4
          %s812 = int_to_ptr.vmem [resolvable:$true] %s811
          %817 = dma.vmem_to_hbm [thread:$0]  %s812, 1024, %s810, %s782, 64, 64, 4
        $region56: #{tpu_custom_call.1} parent=35 // pred_fallthru
          _
      $region36: #{tpu_custom_call.1} parent=5 // pred_fallthru
        _
      %p818 = scmp.le.s32.totalorder 2, %s22
      // Predicated region
      $region57: #{tpu_custom_call.1} parent=5 // pred_check
        %p819 = pneg %p818
      $region58: #{tpu_custom_call.1} parent=5 // pred_check_branch
        %821 = sbr.rel (%p819) target = $region60
      $region59: #{tpu_custom_call.1} parent=5 // pred_region
        %s822 = ssub.s32 %s22, 2
        // Predicated region
        $region61: #{tpu_custom_call.1} parent=59 // pred_check
          %p823 = pneg %p140
        $region62: #{tpu_custom_call.1} parent=59 // pred_check_branch
          %825 = sbr.rel (%p823) target = $region64
        $region63: #{tpu_custom_call.1} parent=59 // pred_region
          %s826 = sand.u32 %s125, 1
          %s827 = scalar_lea.sflag [#allocation4], %s826
          %s828 = sand.u32 %s125, 1
          %s829 = smul.addr %s828, 128
          %s830 = scalar_lea.vmem [#allocation8], %s829
          %831 = dma.done %s827, 2048
        $region64: #{tpu_custom_call.1} parent=59 // pred_fallthru
          _
        // Predicated region
        $region65: #{tpu_custom_call.1} parent=59 // pred_check
          %p832 = pneg %p166
        $region66: #{tpu_custom_call.1} parent=59 // pred_check_branch
          %834 = sbr.rel (%p832) target = $region68
        $region67: #{tpu_custom_call.1} parent=59 // pred_region
          %s835 = sand.u32 %s151, 1
          %s836 = scalar_lea.sflag [#allocation10], %s835
          %s837 = sand.u32 %s151, 1
          %s838 = smul.addr %s837, 64
          %s839 = scalar_lea.vmem [#allocation9], %s838
          %840 = dma.done %s836, 1024
        $region68: #{tpu_custom_call.1} parent=59 // pred_fallthru
          _
      $region60: #{tpu_custom_call.1} parent=5 // pred_fallthru
        _
    $region6: #{tpu_custom_call.1} parent=1 // loop_footer
      %s26 = sadd.s32 1, %s22
    $region7: #{tpu_custom_call.1} parent=1 // loop_footer_branch
      %21 = sbr.rel target = $region3
    $region8: #{tpu_custom_call.1} parent=1 // loop_exit
      _
    %841 = vsyncpa [#allocation3], 1
    %s842 = scalar_lea.sflag [#allocation3], 1
    %843 = vsyncpa %s842, 1
    %844 = vsyncpa [#allocation6], 1
    %845 = vsyncpa [#allocation4], 1
    %s846 = scalar_lea.sflag [#allocation4], 1
    %847 = vsyncpa %s846, 1
    %848 = vsyncpa [#allocation10], 1
    %s849 = scalar_lea.sflag [#allocation10], 1
    %850 = vsyncpa %s849, 1

</llo_original>
